<compile_context>
chip_gen: v7x
topology: tpu7x:2x2x1
jax: 0.10.0
libtpu: 0.0.40
codegen_flags: <defaults>
</compile_context>

<pallas_src>
import jax
import jax.numpy as jnp
from jax.experimental import pallas as pl
from jax.experimental.pallas import tpu as pltpu


def _bfilm_kernel(x_ref, w_ref, b_ref, gamma_ref, beta_ref):
    # x_ref     : (TB, S, TN)   -- N (pooled axis) on lanes, S (block_size) on sublanes
    # w_ref     : (2D, 1), b_ref: (2D, 1)
    # gamma_ref , beta_ref: (TB, D, TN)
    S = x_ref.shape[1]
    D = gamma_ref.shape[1]

    x = x_ref[...]                                    # (TB, S, TN), native dtype
    # MaxPool1d(kernel=stride=block_size): reduce over S with an elementwise maximum chain
    # so everything stays on the VPU with full 128-lane vregs and N remains lane-dense.
    if S <= 64:
        pooled = x[:, 0, :]
        for s in range(1, S):
            pooled = jnp.maximum(pooled, x[:, s, :])
    else:
        pooled = jnp.max(x, axis=1)
    pooled = pooled.astype(jnp.float32)[:, None, :]   # (TB, 1, TN)

    w = w_ref[...].astype(jnp.float32)                # (2D, 1)
    b = b_ref[...].astype(jnp.float32)                # (2D, 1)
    # Linear(1, 2D) per pooled scalar == broadcasted FMA; fused (gamma, beta) slab.
    y = pooled * w[None, :, :] + b[None, :, :]        # (TB, 2D, TN), f32
    gamma_ref[...] = y[:, :D, :].astype(gamma_ref.dtype)
    beta_ref[...] = y[:, D:, :].astype(beta_ref.dtype)


def _choose_tiles(B, S, N, D, x_bytes, out_bytes, vmem_budget_bytes=8 * 1024 * 1024):
    """Pick (TB, TN). TN is lane-dense (a multiple of 128 that divides N, else the full N),
    TB is sized so the double-buffered working set fits well inside the scoped VMEM default
    on every generation (v5e 16 MiB, v6e/v7x 32 MiB)."""
    if N % 128 == 0:
        TN = 128
        while TN * 2 <= min(N, 1024) and N % (TN * 2) == 0:
            TN *= 2
    else:
        TN = N  # full-extent block (allowed even when < 128 / not a multiple of 128)
    per_row = S * TN * x_bytes + 2 * D * TN * out_bytes   # bytes per batch row per grid step
    TB = int(max(1, min(B, vmem_budget_bytes // (2 * per_row))))  # x2 for double buffering
    return TB, TN


def bfilm_forward(x, weight, bias, block_num, output_dim):
    """x: (B, L); weight: (2*output_dim, 1); bias: (2*output_dim,).
    Returns (gamma, beta), each (B, output_dim, N), matching the PyTorch module."""
    B, L = x.shape
    block_size = L // block_num
    pooled_len = L // block_size
    if pooled_len != block_num:
        # Non-divisible branch of the PyTorch forward: nearest interpolate then re-pool.
        # torch 'nearest' upsample: out[i] = in[floor(i * L / new_L)].
        # TODO(synk): fold this gather into the kernel (scalar-prefetched offsets) so x is
        # not re-materialized in HBM before an HBM-bound kernel.
        block_size += 1
        padding = (block_size * block_num - L + 1) // 2
        new_L = L + 2 * padding
        idx = (jnp.arange(new_L) * L) // new_L
        x = x[:, idx]
        L = new_L
        pooled_len = L // block_size

    S, N, D = block_size, pooled_len, output_dim
    # MaxPool1d with no padding truncates any remainder, then put N on the lane axis.
    # TODO(synk): the (B, N, S) -> (B, S, N) transpose costs one extra XLA pass over x; it
    # buys lane-dense loads, a VPU-only reduction and lane-dense stores inside the kernel.
    x3 = jnp.swapaxes(x[:, : N * S].reshape(B, N, S), 1, 2)   # (B, S, N), native dtype

    out_dtype = jnp.result_type(x.dtype, weight.dtype)
    w2 = weight.reshape(2 * D, 1)
    b2 = bias.reshape(2 * D, 1)

    TB, TN = _choose_tiles(B, S, N, D, x.dtype.itemsize, jnp.dtype(out_dtype).itemsize)
    grid = (pl.cdiv(B, TB), pl.cdiv(N, TN))

    gamma, beta = pl.pallas_call(
        _bfilm_kernel,
        out_shape=(
            jax.ShapeDtypeStruct((B, D, N), out_dtype),
            jax.ShapeDtypeStruct((B, D, N), out_dtype),
        ),
        grid=grid,
        in_specs=[
            pl.BlockSpec((TB, S, TN), lambda i, j: (i, 0, j)),   # x tile, N lane-dense
            pl.BlockSpec((2 * D, 1), lambda i, j: (0, 0)),       # weight, stays resident
            pl.BlockSpec((2 * D, 1), lambda i, j: (0, 0)),       # bias, stays resident
        ],
        out_specs=(
            pl.BlockSpec((TB, D, TN), lambda i, j: (i, 0, j)),
            pl.BlockSpec((TB, D, TN), lambda i, j: (i, 0, j)),
        ),
        compiler_params=pltpu.CompilerParams(
            dimension_semantics=("parallel", "parallel"),
            vmem_limit_bytes=32 * 1024 * 1024,
        ),
    )(x3, w2, b2)
    return gamma, beta


def _bfilm_reference(x, weight, bias, block_num, output_dim):
    """Plain-JAX reference of the same forward pass (mirrors the PyTorch module)."""
    B, L = x.shape
    bs = L // block_num
    n = L // bs
    if n != block_num:
        bs += 1
        padding = (bs * block_num - L + 1) // 2
        new_L = L + 2 * padding
        idx = (jnp.arange(new_L) * L) // new_L
        x = x[:, idx]
        L = new_L
        n = L // bs
    pooled = jnp.max(x[:, : n * bs].reshape(B, n, bs), axis=-1)                 # (B, N)
    y = pooled[..., None] * weight[:, 0][None, None, :] + bias[None, None, :]   # (B, N, 2D)
    y = jnp.transpose(y, (0, 2, 1))                                              # (B, 2D, N)
    return y[:, :output_dim, :], y[:, output_dim:, :]


if __name__ == "__main__":
    key = jax.random.PRNGKey(0)
    kx, kw, kb = jax.random.split(key, 3)

    # Small shapes consistent with the module: input_dim must be 1 (pooled_x.unsqueeze(-1)).
    B, L = 2, 64
    block_num, input_dim, output_dim = 8, 1, 4

    x = jax.random.normal(kx, (B, L), dtype=jnp.float32)
    weight = 0.5 * jax.random.normal(kw, (2 * output_dim, input_dim), dtype=jnp.float32)
    bias = 0.1 * jax.random.normal(kb, (2 * output_dim,), dtype=jnp.float32)

    gamma, beta = bfilm_forward(x, weight, bias, block_num, output_dim)
    jax.block_until_ready((gamma, beta))

    ref_gamma, ref_beta = _bfilm_reference(x, weight, bias, block_num, output_dim)
    assert gamma.shape == (B, output_dim, block_num)
    assert beta.shape == (B, output_dim, block_num)
    assert jnp.allclose(gamma, ref_gamma, atol=1e-5)
    assert jnp.allclose(beta, ref_beta, atol=1e-5)

    # Non-divisible (interpolate-and-repool) branch: L=11, block_num=4 triggers it.
    x2 = jax.random.normal(kx, (B, 11), dtype=jnp.float32)
    w_nd = 0.5 * jax.random.normal(kw, (2 * 3, 1), dtype=jnp.float32)
    b_nd = 0.1 * jax.random.normal(kb, (2 * 3,), dtype=jnp.float32)
    g2, be2 = bfilm_forward(x2, w_nd, b_nd, 4, 3)
    jax.block_until_ready((g2, be2))
    rg2, rb2 = _bfilm_reference(x2, w_nd, b_nd, 4, 3)
    assert g2.shape == rg2.shape and be2.shape == rb2.shape
    assert jnp.allclose(g2, rg2, atol=1e-5)
    assert jnp.allclose(be2, rb2, atol=1e-5)

    print("KERNEL_OK")
</pallas_src>

<mosaic_0001>
module attributes {stable_mosaic.version = 11 : i64} {
  func.func @_bfilm_kernel(%arg0: i32, %arg1: i32, %arg2: memref<2x8x8xf32, #tpu.memory_space<vmem>>, %arg3: memref<8x1xf32, #tpu.memory_space<vmem>>, %arg4: memref<8x1xf32, #tpu.memory_space<vmem>>, %arg5: memref<2x4x8xf32, #tpu.memory_space<vmem>>, %arg6: memref<2x4x8xf32, #tpu.memory_space<vmem>>) attributes {dimension_semantics = [#tpu.dimension_semantics<parallel>, #tpu.dimension_semantics<parallel>], iteration_bounds = array<i64: 1, 1>, scalar_prefetch = 0 : i64, scratch_operands = 0 : i64, tpu.core_type = #tpu.core_type<tc>, window_params = [{transform_indices = @transform_0, window_bounds = array<i64: 2, 8, 8>}, {pipeline_mode = #tpu.pipeline_mode<synchronous>, transform_indices = @transform_1, window_bounds = array<i64: 8, 1>}, {pipeline_mode = #tpu.pipeline_mode<synchronous>, transform_indices = @transform_2, window_bounds = array<i64: 8, 1>}, {transform_indices = @transform_3, window_bounds = array<i64: 2, 4, 8>}, {transform_indices = @transform_4, window_bounds = array<i64: 2, 4, 8>}]} {
    %c0 = arith.constant 0 : index
    %c0_0 = arith.constant 0 : index
    %c0_1 = arith.constant 0 : index
    %0 = vector.load %arg2[%c0, %c0_0, %c0_1] : memref<2x8x8xf32, #tpu.memory_space<vmem>>, vector<2x8x8xf32>
    %1 = vector.extract_strided_slice %0 {offsets = [0, 0, 0], sizes = [2, 1, 8], strides = [1, 1, 1]} : vector<2x8x8xf32> to vector<2x1x8xf32>
    %2 = vector.shape_cast %1 : vector<2x1x8xf32> to vector<2x8xf32>
    %3 = vector.extract_strided_slice %0 {offsets = [0, 1, 0], sizes = [2, 1, 8], strides = [1, 1, 1]} : vector<2x8x8xf32> to vector<2x1x8xf32>
    %4 = vector.shape_cast %3 : vector<2x1x8xf32> to vector<2x8xf32>
    %5 = arith.maximumf %2, %4 : vector<2x8xf32>
    %6 = vector.extract_strided_slice %0 {offsets = [0, 2, 0], sizes = [2, 1, 8], strides = [1, 1, 1]} : vector<2x8x8xf32> to vector<2x1x8xf32>
    %7 = vector.shape_cast %6 : vector<2x1x8xf32> to vector<2x8xf32>
    %8 = arith.maximumf %5, %7 : vector<2x8xf32>
    %9 = vector.extract_strided_slice %0 {offsets = [0, 3, 0], sizes = [2, 1, 8], strides = [1, 1, 1]} : vector<2x8x8xf32> to vector<2x1x8xf32>
    %10 = vector.shape_cast %9 : vector<2x1x8xf32> to vector<2x8xf32>
    %11 = arith.maximumf %8, %10 : vector<2x8xf32>
    %12 = vector.extract_strided_slice %0 {offsets = [0, 4, 0], sizes = [2, 1, 8], strides = [1, 1, 1]} : vector<2x8x8xf32> to vector<2x1x8xf32>
    %13 = vector.shape_cast %12 : vector<2x1x8xf32> to vector<2x8xf32>
    %14 = arith.maximumf %11, %13 : vector<2x8xf32>
    %15 = vector.extract_strided_slice %0 {offsets = [0, 5, 0], sizes = [2, 1, 8], strides = [1, 1, 1]} : vector<2x8x8xf32> to vector<2x1x8xf32>
    %16 = vector.shape_cast %15 : vector<2x1x8xf32> to vector<2x8xf32>
    %17 = arith.maximumf %14, %16 : vector<2x8xf32>
    %18 = vector.extract_strided_slice %0 {offsets = [0, 6, 0], sizes = [2, 1, 8], strides = [1, 1, 1]} : vector<2x8x8xf32> to vector<2x1x8xf32>
    %19 = vector.shape_cast %18 : vector<2x1x8xf32> to vector<2x8xf32>
    %20 = arith.maximumf %17, %19 : vector<2x8xf32>
    %21 = vector.extract_strided_slice %0 {offsets = [0, 7, 0], sizes = [2, 1, 8], strides = [1, 1, 1]} : vector<2x8x8xf32> to vector<2x1x8xf32>
    %22 = vector.shape_cast %21 : vector<2x1x8xf32> to vector<2x8xf32>
    %23 = arith.maximumf %20, %22 : vector<2x8xf32>
    %24 = vector.shape_cast %23 : vector<2x8xf32> to vector<2x1x8xf32>
    %c0_2 = arith.constant 0 : index
    %c0_3 = arith.constant 0 : index
    %25 = vector.load %arg3[%c0_2, %c0_3] : memref<8x1xf32, #tpu.memory_space<vmem>>, vector<8x1xf32>
    %c0_4 = arith.constant 0 : index
    %c0_5 = arith.constant 0 : index
    %26 = vector.load %arg4[%c0_4, %c0_5] : memref<8x1xf32, #tpu.memory_space<vmem>>, vector<8x1xf32>
    %27 = vector.shape_cast %25 : vector<8x1xf32> to vector<1x8x1xf32>
    %28 = vector.broadcast %24 : vector<2x1x8xf32> to vector<2x8x8xf32>
    %29 = vector.broadcast %27 : vector<1x8x1xf32> to vector<2x8x8xf32>
    %30 = arith.mulf %28, %29 : vector<2x8x8xf32>
    %31 = vector.shape_cast %26 : vector<8x1xf32> to vector<1x8x1xf32>
    %32 = vector.broadcast %31 : vector<1x8x1xf32> to vector<2x8x8xf32>
    %33 = arith.addf %30, %32 : vector<2x8x8xf32>
    %34 = vector.extract_strided_slice %33 {offsets = [0, 0, 0], sizes = [2, 4, 8], strides = [1, 1, 1]} : vector<2x8x8xf32> to vector<2x4x8xf32>
    %c0_6 = arith.constant 0 : index
    %c0_7 = arith.constant 0 : index
    %c0_8 = arith.constant 0 : index
    %35 = vector.load %arg5[%c0_6, %c0_7, %c0_8] : memref<2x4x8xf32, #tpu.memory_space<vmem>>, vector<2x4x8xf32>
    tpu.vector_store %arg5[%c0_6, %c0_7, %c0_8], %34 {strides = array<i32>} : memref<2x4x8xf32, #tpu.memory_space<vmem>>, vector<2x4x8xf32>,
    %36 = vector.extract_strided_slice %33 {offsets = [0, 4, 0], sizes = [2, 4, 8], strides = [1, 1, 1]} : vector<2x8x8xf32> to vector<2x4x8xf32>
    %c0_9 = arith.constant 0 : index
    %c0_10 = arith.constant 0 : index
    %c0_11 = arith.constant 0 : index
    %37 = vector.load %arg6[%c0_9, %c0_10, %c0_11] : memref<2x4x8xf32, #tpu.memory_space<vmem>>, vector<2x4x8xf32>
    tpu.vector_store %arg6[%c0_9, %c0_10, %c0_11], %36 {strides = array<i32>} : memref<2x4x8xf32, #tpu.memory_space<vmem>>, vector<2x4x8xf32>,
    return
  }
  func.func @transform_0(%arg0: i32, %arg1: i32) -> (i32, i32, i32) {
    %c0_i32 = arith.constant 0 : i32
    %c0_i32_0 = arith.constant 0 : i32
    return %arg0, %c0_i32, %arg1 : i32, i32, i32
  }
  func.func @transform_1(%arg0: i32, %arg1: i32) -> (i32, i32) {
    %c0_i32 = arith.constant 0 : i32
    %c0_i32_0 = arith.constant 0 : i32
    %c0_i32_1 = arith.constant 0 : i32
    return %c0_i32, %c0_i32_0 : i32, i32
  }
  func.func @transform_2(%arg0: i32, %arg1: i32) -> (i32, i32) {
    %c0_i32 = arith.constant 0 : i32
    %c0_i32_0 = arith.constant 0 : i32
    %c0_i32_1 = arith.constant 0 : i32
    return %c0_i32, %c0_i32_0 : i32, i32
  }
  func.func @transform_3(%arg0: i32, %arg1: i32) -> (i32, i32, i32) {
    %c0_i32 = arith.constant 0 : i32
    %c0_i32_0 = arith.constant 0 : i32
    return %arg0, %c0_i32, %arg1 : i32, i32, i32
  }
  func.func @transform_4(%arg0: i32, %arg1: i32) -> (i32, i32, i32) {
    %c0_i32 = arith.constant 0 : i32
    %c0_i32_0 = arith.constant 0 : i32
    return %arg0, %c0_i32, %arg1 : i32, i32, i32
  }
}

</mosaic_0001>

<llo_original>
// kernel: tpu_custom_call.1
$region0: #{tpu_custom_call.1}
  #allocation0 [shape = 'u32[]', space=smem, size = 0x4, offset = 0x4, fixed_abs, tag = 'smem constant byte address 0x4 - core index']
  #allocation1 [shape = 'u32[144,128]{1,0:T(1,128)}', space=vmem, size = 0x12000, scoped, tag = 'internal scratch']
  %s0 = inlined_call_operand.vmem [shape: f32[2,8,8], index: 0, kind: input, shape index: {}]
  %s1 = inlined_call_operand.vmem [shape: f32[8,1], index: 1, kind: input, shape index: {}]
  %s2 = inlined_call_operand.vmem [shape: f32[8,1], index: 2, kind: input, shape index: {}]
  %s3 = inlined_call_operand.hbm [shape: f32[2,4,8], index: 3, kind: output, shape index: {0}]
  %s4 = inlined_call_operand.hbm [shape: f32[2,4,8], index: 4, kind: output, shape index: {1}]
  %5 = xla_tuple %s3, %s4
  %s6 = sld [smem:[#allocation0]]
  $region30: #{tpu_custom_call.1} parent=0
    _
  %s8 = ssub.s32 1, %s6
  %s9 = scalar_select 0, %s8, %s6
  $region1: #{tpu_custom_call.1} parent=0
    #allocation2 [shape = 'u8[4096]{0}', space=vmem, size = 0x1000, scoped, tag = 'output window, operand 0, single buffered']
    #allocation3 [shape = 's32[1]{0}', space=sflag, size = 0x4, scoped, tag = 'scoped memory for tpu_custom_call.1']
    #allocation4 [shape = 'u8[4096]{0}', space=vmem, size = 0x1000, scoped, tag = 'output window, operand 1, single buffered']
    #allocation5 [shape = 's32[1]{0}', space=sflag, size = 0x4, scoped, tag = 'scoped memory for tpu_custom_call.1']
    %10 = vsyncpa [#allocation3], 0
    %11 = vsyncpa [#allocation5], 0
    // Predicated region
    $region2: #{tpu_custom_call.1} parent=1 // pred_check
      _
    $region3: #{tpu_custom_call.1} parent=1 // pred_check_branch
      %13 = sbr.rel (0) target = $region5
    $region4: #{tpu_custom_call.1} parent=1 // pred_region
      _
    $region5: #{tpu_custom_call.1} parent=1 // pred_fallthru
      _
    // Predicated region
    $region6: #{tpu_custom_call.1} parent=1 // pred_check
      _
    $region7: #{tpu_custom_call.1} parent=1 // pred_check_branch
      %15 = sbr.rel (0) target = $region9
    $region8: #{tpu_custom_call.1} parent=1 // pred_region
      _
    $region9: #{tpu_custom_call.1} parent=1 // pred_fallthru
      _
    // Predicated region
    $region10: #{tpu_custom_call.1} parent=1 // pred_check
      _
    $region11: #{tpu_custom_call.1} parent=1 // pred_check_branch
      %17 = sbr.rel (0) target = $region13
    $region12: #{tpu_custom_call.1} parent=1 // pred_region
      _
    $region13: #{tpu_custom_call.1} parent=1 // pred_fallthru
      _
    %v18 = vld [vmem:[%s0] sm:$0xff]
    %v19 = vld [vmem:[%s0 + $0x8] sm:$0xff]
    %v22 = vrot.slane %v18, 1
    %v23 = vrot.slane %v19, 1
    %v26 = vmax.f32 %v18, %v22
    %v27 = vmax.f32 %v19, %v23
    %v28 = vrot.slane %v18, 2
    %v29 = vrot.slane %v19, 2
    %v32 = vmax.f32 %v26, %v28
    %v33 = vmax.f32 %v27, %v29
    %v34 = vrot.slane %v18, 3
    %v35 = vrot.slane %v19, 3
    %v38 = vmax.f32 %v32, %v34
    %v39 = vmax.f32 %v33, %v35
    %v40 = vrot.slane %v18, 4
    %v41 = vrot.slane %v19, 4
    %v44 = vmax.f32 %v38, %v40
    %v45 = vmax.f32 %v39, %v41
    %v46 = vrot.slane %v18, 5
    %v47 = vrot.slane %v19, 5
    %v50 = vmax.f32 %v44, %v46
    %v51 = vmax.f32 %v45, %v47
    %v52 = vrot.slane %v18, 6
    %v53 = vrot.slane %v19, 6
    %v56 = vmax.f32 %v50, %v52
    %v57 = vmax.f32 %v51, %v53
    %v58 = vrot.slane %v18, 7
    %v59 = vrot.slane %v19, 7
    %v62 = vmax.f32 %v56, %v58
    %v63 = vmax.f32 %v57, %v59
    %v64 = vld [vmem:[%s1] sm:$0xff]
    %v65 = vld [vmem:[%s2] sm:$0xff]
    %v66 = vlaneseq
    %v67 = vshrl.u32 %v66, 7
    %v68 = vsub.s32 0, %v67
    %v69 = vrot.slane %v62, %v68
    %v70 = vlaneseq
    %v71 = vshrl.u32 %v70, 7
    %v72 = vsub.s32 0, %v71
    %v73 = vrot.slane %v63, %v72
    %75 = vset.pattern.permute.xlu0 0
    %76 = vperm.xlu0 %75, %v64
    %v77 = vpop.permute.xlu0 %76
    %v79 = vmul.f32 %v69, %v77
    %v80 = vmul.f32 %v73, %v77
    %82 = vset.pattern.permute.xlu0 0
    %83 = vperm.xlu0 %82, %v65
    %v84 = vpop.permute.xlu0 %83
    %v86 = vadd.f32 %v79, %v84
    %v87 = vadd.f32 %v80, %v84
    %vm88 = vcmask 60416
    %89 = vst.msk [vmem:[#allocation2] sm:$0xf] %vm88, %v86
    %90 = vst.msk [vmem:[#allocation2 + $0x4] sm:$0xf] %vm88, %v87
    %vm91 = vcmask 64516
    %92 = vst.msk [vmem:[#allocation4 - $0x4] sm:$0xf0] %vm91, %v86
    %93 = vst.msk [vmem:[#allocation4] sm:$0xf0] %vm91, %v87
    // Predicated region
    $region14: #{tpu_custom_call.1} parent=1 // pred_check
      _
    $region15: #{tpu_custom_call.1} parent=1 // pred_check_branch
      %95 = sbr.rel (0) target = $region17
    $region16: #{tpu_custom_call.1} parent=1 // pred_region
      %s97 = ssub.s32 128, 128
      %98 = vsyncadd [#allocation3], %s97
      %s99 = sshll.u32 [#allocation2], 4
      %s100 = int_to_ptr.vmem [resolvable:$true] %s99
      %105 = dma.vmem_to_hbm [thread:$0]  %s100, 128, %s3, [#allocation3], 64, 64, 4
    $region17: #{tpu_custom_call.1} parent=1 // pred_fallthru
      _
    // Predicated region
    $region18: #{tpu_custom_call.1} parent=1 // pred_check
      _
    $region19: #{tpu_custom_call.1} parent=1 // pred_check_branch
      %107 = sbr.rel (0) target = $region21
    $region20: #{tpu_custom_call.1} parent=1 // pred_region
      %s109 = ssub.s32 128, 128
      %110 = vsyncadd [#allocation5], %s109
      %s111 = sshll.u32 [#allocation4], 4
      %s112 = int_to_ptr.vmem [resolvable:$true] %s111
      %117 = dma.vmem_to_hbm [thread:$0]  %s112, 128, %s4, [#allocation5], 64, 64, 4
    $region21: #{tpu_custom_call.1} parent=1 // pred_fallthru
      _
    // Predicated region
    $region22: #{tpu_custom_call.1} parent=1 // pred_check
      _
    $region23: #{tpu_custom_call.1} parent=1 // pred_check_branch
      %119 = sbr.rel (0) target = $region25
    $region24: #{tpu_custom_call.1} parent=1 // pred_region
      %120 = dma.done [#allocation3], 128
    $region25: #{tpu_custom_call.1} parent=1 // pred_fallthru
      _
    // Predicated region
    $region26: #{tpu_custom_call.1} parent=1 // pred_check
      _
    $region27: #{tpu_custom_call.1} parent=1 // pred_check_branch
      %122 = sbr.rel (0) target = $region29
    $region28: #{tpu_custom_call.1} parent=1 // pred_region
      %123 = dma.done [#allocation5], 128
    $region29: #{tpu_custom_call.1} parent=1 // pred_fallthru
      _
    %124 = vsyncpa [#allocation3], 1
    %125 = vsyncpa [#allocation5], 1

</llo_original>
